<compile_context>
chip_gen: v7x
topology: tpu7x:2x2x1
jax: 0.10.0
libtpu: 0.0.40
codegen_flags: <defaults>
</compile_context>

<pallas_src>
import math
import jax
import jax.numpy as jnp
from jax import lax
from jax.experimental import pallas as pl
from jax.experimental.pallas import tpu as pltpu


def _round_up(x, m):
    return -(-x // m) * m


def _pick_tile(t, candidates):
    """Pick the tile size that minimizes padded extent; tie-break on larger tile."""
    best_c, best_p = None, None
    for c in candidates:
        p = _round_up(t, c)
        if best_p is None or p < best_p or (p == best_p and c > best_c):
            best_c, best_p = c, p
    if best_c is None:          # degenerate candidate list
        best_c, best_p = 128, _round_up(t, 128)
    return best_c, best_p


def _make_kernel(tn, m2_resident):
    def kernel(m1_ref, m2_ref, w_ref, out_ref, wx_ref, xf_ref):
        # m1_ref : (1, tm, Dp) bf16
        # m2_ref : (1, T2p, Dp) bf16 if m2_resident else (1, tn, Dp) bf16
        # w_ref  : (3, Dp) f32   (rows: x_w, y_w, dot_w)
        # out_ref: (1, tm, tn)
        # wx_ref : (tm, Dp) bf16 VMEM scratch  (m1 * dot_w, cached across j)
        # xf_ref : (tm, 1)  f32  VMEM scratch  (row bias, cached across j)
        j = pl.program_id(2)

        # Work that depends only on (b, i): done once per row tile. Valid because
        # j is the innermost "arbitrary" (non-sharded) grid axis, so every row
        # tile visits j == 0 first on its core.
        @pl.when(j == 0)
        def _():
            m1 = m1_ref[0].astype(jnp.float32)                 # (tm, Dp)
            xw = w_ref[0:1, :]                                  # (1, Dp) f32
            dw = w_ref[2:3, :]                                  # (1, Dp) f32
            xf_ref[...] = jnp.sum(m1 * xw, axis=-1, keepdims=True)   # (tm, 1)
            wx_ref[...] = (m1 * dw).astype(jnp.bfloat16)              # (tm, Dp)

        if m2_resident:
            # Resident per-batch m2: slice the current tn-wide window.
            j0 = pl.multiple_of(j * tn, tn)
            m2 = m2_ref[0, pl.ds(j0, tn), :]                    # (tn, Dp) bf16
        else:
            m2 = m2_ref[0]                                      # (tn, Dp) bf16

        yw = w_ref[1:2, :].astype(jnp.bfloat16)                 # (1, Dp)

        # Column bias on the MXU: (1, Dp) x (tn, Dp) contracting lanes -> (1, tn),
        # no transpose and no cross-lane reduce.
        y_f = lax.dot_general(
            yw, m2,
            dimension_numbers=(((1,), (1,)), ((), ())),
            preferred_element_type=jnp.float32)                 # (1, tn)

        # Bilinear term: (m1 * dot_w) @ m2^T expressed as a lane contraction of
        # both operands (no explicit m2 transpose), bf16 in / f32 accumulate.
        dot = lax.dot_general(
            wx_ref[...], m2,
            dimension_numbers=(((1,), (1,)), ((), ())),
            preferred_element_type=jnp.float32)                 # (tm, tn)

        out_ref[0] = (dot + xf_ref[...] + y_f).astype(out_ref.dtype)

    return kernel


def trilinear_attention(matrix_1, matrix_2, x_weights, y_weights, dot_weights,
                        *, tm_max=512, tn_max=256, out_dtype=jnp.float32,
                        m2_resident=None):
    """matrix_1: (B, T1, D), matrix_2: (B, T2, D). Weights are (1, D) each."""
    B, T1, D = matrix_1.shape
    B2, T2, D2 = matrix_2.shape
    assert B == B2 and D == D2

    Dp = _round_up(D, 128)
    tm, T1p = _pick_tile(T1, tuple(c for c in (512, 256, 128) if c <= tm_max))
    tn, T2p = _pick_tile(T2, tuple(c for c in (256, 128) if c <= tn_max))

    # v7x megacore: make sure the parallel grid axes (b, i) expose >= 2 steps.
    if B * (T1p // tm) < 2 and tm > 128:
        tm //= 2                      # T1p stays a multiple of the halved tm

    def vmem_estimate(resident):
        m1_b = 2 * tm * Dp * 2                             # double-buffered bf16
        m2_rows = T2p if resident else tn
        m2_b = 2 * m2_rows * Dp * 2
        out_b = 2 * tm * tn * jnp.dtype(out_dtype).itemsize
        scr_b = tm * Dp * 2 + tm * 4
        w_b = 2 * 3 * Dp * 4
        return m1_b + m2_b + out_b + scr_b + w_b

    BUDGET = 40 * 1024 * 1024          # leaves headroom under v7x's 64 MiB VMEM
    if m2_resident is None:
        # Resident per-batch m2 (read once per batch instead of once per row
        # tile) whenever its double-buffered copy is comfortably small.
        m2_resident = (2 * T2p * Dp * 2 <= 16 * 1024 * 1024
                       and vmem_estimate(True) <= BUDGET)
    elif m2_resident and vmem_estimate(True) > BUDGET:
        m2_resident = False
    while vmem_estimate(m2_resident) > BUDGET and tm > 128:
        tm //= 2
    while vmem_estimate(m2_resident) > BUDGET and tn > 128:
        tn //= 2                      # T2p stays a multiple of the halved tn

    # Zero-pad (benign for all three terms) and store bf16 copies in HBM so the
    # streamed DMAs are half the bytes. Weights stay f32 (tiny, resident).
    bf16 = jnp.bfloat16
    m1 = jnp.pad(matrix_1.astype(bf16), ((0, 0), (0, T1p - T1), (0, Dp - D)))
    m2 = jnp.pad(matrix_2.astype(bf16), ((0, 0), (0, T2p - T2), (0, Dp - D)))
    w = jnp.concatenate([x_weights, y_weights, dot_weights], axis=0)
    w = jnp.pad(w.astype(jnp.float32), ((0, 0), (0, Dp - D)))

    grid = (B, T1p // tm, T2p // tn)

    if m2_resident:
        m2_spec = pl.BlockSpec((1, T2p, Dp), lambda b, i, j: (b, 0, 0))
    else:
        m2_spec = pl.BlockSpec((1, tn, Dp), lambda b, i, j: (b, j, 0))

    out = pl.pallas_call(
        _make_kernel(tn, m2_resident),
        out_shape=jax.ShapeDtypeStruct((B, T1p, T2p), out_dtype),
        grid_spec=pltpu.PrefetchScalarGridSpec(
            num_scalar_prefetch=0,
            grid=grid,
            in_specs=[
                pl.BlockSpec((1, tm, Dp), lambda b, i, j: (b, i, 0)),
                m2_spec,
                pl.BlockSpec((3, Dp), lambda b, i, j: (0, 0)),
            ],
            out_specs=pl.BlockSpec((1, tm, tn), lambda b, i, j: (b, i, j)),
            scratch_shapes=[
                pltpu.VMEM((tm, Dp), jnp.bfloat16),   # cached m1 * dot_w
                pltpu.VMEM((tm, 1), jnp.float32),     # cached row bias
            ],
        ),
        compiler_params=pltpu.CompilerParams(
            # b and the T1-tile axis are independent (megacore-shardable);
            # the T2-tile axis carries the cached scratches -> arbitrary.
            dimension_semantics=("parallel", "parallel", "arbitrary"),
            vmem_limit_bytes=48 * 1024 * 1024,
        ),
    )(m1, m2, w)

    return out[:, :T1, :T2]


def init_params(input_dim, key):
    """Deterministic init matching TriLinearAttention.reset_parameters:
    uniform(-std, std) with std = sqrt(6 / (input_dim * 3 + 1))."""
    std = math.sqrt(6.0 / (input_dim * 3 + 1))
    kx, ky, kd = jax.random.split(key, 3)
    x_w = jax.random.uniform(kx, (1, input_dim), jnp.float32, -std, std)
    y_w = jax.random.uniform(ky, (1, input_dim), jnp.float32, -std, std)
    dot_w = jax.random.uniform(kd, (1, input_dim), jnp.float32, -std, std)
    return x_w, y_w, dot_w


def reference(matrix_1, matrix_2, x_w, y_w, dot_w):
    # Pure-JAX f32 reference mirroring the PyTorch forward exactly.
    x_factors = jnp.einsum("btd,d->bt", matrix_1, x_w[0])[:, :, None]   # (B, T1, 1)
    y_factors = jnp.einsum("btd,d->bt", matrix_2, y_w[0])[:, None, :]   # (B, 1, T2)
    weighted_x = matrix_1 * dot_w[0][None, None, :]
    dot_factors = jnp.einsum("bid,bjd->bij", weighted_x, matrix_2)
    return dot_factors + x_factors + y_factors


def _run_case(key, B, T1, T2, D, **kwargs):
    k1, k2, kp = jax.random.split(key, 3)
    matrix_1 = jax.random.normal(k1, (B, T1, D), jnp.float32)
    matrix_2 = jax.random.normal(k2, (B, T2, D), jnp.float32)
    x_w, y_w, dot_w = init_params(D, kp)

    out = trilinear_attention(matrix_1, matrix_2, x_w, y_w, dot_w, **kwargs)
    out = jax.block_until_ready(out)
    ref = reference(matrix_1, matrix_2, x_w, y_w, dot_w)

    assert out.shape == (B, T1, T2)
    # bf16 MXU feed with f32 accumulation -> loosened tolerance vs f32 reference.
    assert jnp.allclose(out, ref, atol=5e-2, rtol=5e-2), \
        f"mismatch vs reference (B={B}, T1={T1}, T2={T2}, D={D})"


if __name__ == "__main__":
    key = jax.random.PRNGKey(0)
    k_a, k_b, k_c = jax.random.split(key, 3)

    # Small single-tile case (resident-m2 path, j == 0 only).
    _run_case(k_a, B=2, T1=16, T2=8, D=32)

    # Multi-tile case: exercises i > 0, j > 0 (cached wx/xf reuse), ragged
    # padding, the megacore tm split, and the in-kernel pl.ds m2 slicing.
    _run_case(k_b, B=1, T1=160, T2=300, D=96)

    # Streaming (non-resident) m2 fallback path.
    _run_case(k_c, B=2, T1=16, T2=8, D=32, m2_resident=False)

    print("KERNEL_OK")
</pallas_src>

<mosaic_0001>
module attributes {stable_mosaic.version = 11 : i64} {
  func.func @kernel(%arg0: i32, %arg1: i32, %arg2: i32, %arg3: memref<1x128x128xbf16, #tpu.memory_space<vmem>>, %arg4: memref<1x128x128xbf16, #tpu.memory_space<vmem>>, %arg5: memref<3x128xf32, #tpu.memory_space<vmem>>, %arg6: memref<1x128x128xf32, #tpu.memory_space<vmem>>, %arg7: memref<128x128xbf16, #tpu.memory_space<vmem>>, %arg8: memref<128x1xf32, #tpu.memory_space<vmem>>) attributes {dimension_semantics = [#tpu.dimension_semantics<parallel>, #tpu.dimension_semantics<parallel>, #tpu.dimension_semantics<arbitrary>], iteration_bounds = array<i64: 2, 1, 1>, scalar_prefetch = 0 : i64, scratch_operands = 2 : i64, tpu.core_type = #tpu.core_type<tc>, window_params = [{transform_indices = @transform_0, window_bounds = array<i64: 1, 128, 128>}, {transform_indices = @transform_1, window_bounds = array<i64: 1, 128, 128>}, {pipeline_mode = #tpu.pipeline_mode<synchronous>, transform_indices = @transform_2, window_bounds = array<i64: 3, 128>}, {transform_indices = @transform_3, window_bounds = array<i64: 1, 128, 128>}]} {
    %c0_i32 = arith.constant 0 : i32
    %0 = arith.cmpi eq, %arg2, %c0_i32 : i32
    %1 = arith.extui %0 : i1 to i32
    %c0_i32_0 = arith.constant 0 : i32
    %2 = arith.cmpi ne, %1, %c0_i32_0 : i32
    scf.if %2 {
      %c0_11 = arith.constant 0 : index
      %c0_12 = arith.constant 0 : index
      %c0_13 = arith.constant 0 : index
      %21 = vector.load %arg3[%c0_11, %c0_12, %c0_13] : memref<1x128x128xbf16, #tpu.memory_space<vmem>>, vector<1x128x128xbf16>
      %22 = vector.shape_cast %21 : vector<1x128x128xbf16> to vector<128x128xbf16>
      %23 = arith.extf %22 : vector<128x128xbf16> to vector<128x128xf32>
      %c0_14 = arith.constant 0 : index
      %c0_15 = arith.constant 0 : index
      %24 = vector.load %arg5[%c0_14, %c0_15] : memref<3x128xf32, #tpu.memory_space<vmem>>, vector<1x128xf32>
      %c2 = arith.constant 2 : index
      %c0_16 = arith.constant 0 : index
      %25 = vector.load %arg5[%c2, %c0_16] : memref<3x128xf32, #tpu.memory_space<vmem>>, vector<1x128xf32>
      %26 = vector.broadcast %24 : vector<1x128xf32> to vector<128x128xf32>
      %27 = arith.mulf %23, %26 : vector<128x128xf32>
      %cst_17 = arith.constant dense<0.000000e+00> : vector<128xf32>
      %28 = vector.multi_reduction <add>, %27, %cst_17 [1] : vector<128x128xf32> to vector<128xf32>
      %29 = vector.shape_cast %28 : vector<128xf32> to vector<128x1xf32>
      %c0_18 = arith.constant 0 : index
      %c0_19 = arith.constant 0 : index
      %30 = vector.load %arg8[%c0_18, %c0_19] : memref<128x1xf32, #tpu.memory_space<vmem>>, vector<128x1xf32>
      tpu.vector_store %arg8[%c0_18, %c0_19], %29 {strides = array<i32>} : memref<128x1xf32, #tpu.memory_space<vmem>>, vector<128x1xf32>,
      %31 = vector.broadcast %25 : vector<1x128xf32> to vector<128x128xf32>
      %32 = arith.mulf %23, %31 : vector<128x128xf32>
      %33 = arith.truncf %32 : vector<128x128xf32> to vector<128x128xbf16>
      %c0_20 = arith.constant 0 : index
      %c0_21 = arith.constant 0 : index
      %34 = vector.load %arg7[%c0_20, %c0_21] : memref<128x128xbf16, #tpu.memory_space<vmem>>, vector<128x128xbf16>
      tpu.vector_store %arg7[%c0_20, %c0_21], %33 {strides = array<i32>} : memref<128x128xbf16, #tpu.memory_space<vmem>>, vector<128x128xbf16>,
    } else {
    }
    %c128_i32 = arith.constant 128 : i32
    %3 = arith.muli %arg2, %c128_i32 : i32
    %4 = tpu.assume_multiple %3, 128 : i32
    %c0 = arith.constant 0 : index
    %5 = arith.index_cast %4 : i32 to index
    %c0_1 = arith.constant 0 : index
    %6 = vector.load %arg4[%c0, %5, %c0_1] : memref<1x128x128xbf16, #tpu.memory_space<vmem>>, vector<1x128x128xbf16>
    %7 = vector.shape_cast %6 : vector<1x128x128xbf16> to vector<128x128xbf16>
    %c1 = arith.constant 1 : index
    %c0_2 = arith.constant 0 : index
    %8 = vector.load %arg5[%c1, %c0_2] : memref<3x128xf32, #tpu.memory_space<vmem>>, vector<1x128xf32>
    %9 = arith.truncf %8 : vector<1x128xf32> to vector<1x128xbf16>
    %cst = arith.constant dense<0.000000e+00> : vector<1x128xf32>
    %10 = tpu.matmul %9, %7, %cst {dimension_numbers = #tpu.dot_dimension_numbers<[1], [1], [0], [0], [0, 0, 1, 0], [], []>} : vector<1x128xbf16>, vector<128x128xbf16>, vector<1x128xf32> -> vector<1x128xf32>
    %c0_3 = arith.constant 0 : index
    %c0_4 = arith.constant 0 : index
    %11 = vector.load %arg7[%c0_3, %c0_4] : memref<128x128xbf16, #tpu.memory_space<vmem>>, vector<128x128xbf16>
    %cst_5 = arith.constant dense<0.000000e+00> : vector<128x128xf32>
    %12 = tpu.matmul %11, %7, %cst_5 {dimension_numbers = #tpu.dot_dimension_numbers<[1], [1], [0], [0], [0, 0, 1, 0], [], []>} : vector<128x128xbf16>, vector<128x128xbf16>, vector<128x128xf32> -> vector<128x128xf32>
    %c0_6 = arith.constant 0 : index
    %c0_7 = arith.constant 0 : index
    %13 = vector.load %arg8[%c0_6, %c0_7] : memref<128x1xf32, #tpu.memory_space<vmem>>, vector<128x1xf32>
    %14 = vector.broadcast %13 : vector<128x1xf32> to vector<128x128xf32>
    %15 = arith.addf %12, %14 : vector<128x128xf32>
    %16 = vector.broadcast %10 : vector<1x128xf32> to vector<128x128xf32>
    %17 = arith.addf %15, %16 : vector<128x128xf32>
    %c0_8 = arith.constant 0 : index
    %c0_9 = arith.constant 0 : index
    %c0_10 = arith.constant 0 : index
    %18 = vector.load %arg6[%c0_8, %c0_9, %c0_10] : memref<1x128x128xf32, #tpu.memory_space<vmem>>, vector<1x128x128xf32>
    %19 = vector.shape_cast %18 : vector<1x128x128xf32> to vector<128x128xf32>
    %20 = vector.shape_cast %17 : vector<128x128xf32> to vector<1x128x128xf32>
    tpu.vector_store %arg6[%c0_8, %c0_9, %c0_10], %20 {strides = array<i32>} : memref<1x128x128xf32, #tpu.memory_space<vmem>>, vector<1x128x128xf32>,
    return
  }
  func.func @transform_0(%arg0: i32, %arg1: i32, %arg2: i32) -> (i32, i32, i32) {
    %c0_i32 = arith.constant 0 : i32
    %c0_i32_0 = arith.constant 0 : i32
    return %arg0, %arg1, %c0_i32 : i32, i32, i32
  }
  func.func @transform_1(%arg0: i32, %arg1: i32, %arg2: i32) -> (i32, i32, i32) {
    %c0_i32 = arith.constant 0 : i32
    %c0_i32_0 = arith.constant 0 : i32
    %c0_i32_1 = arith.constant 0 : i32
    return %arg0, %c0_i32, %c0_i32_0 : i32, i32, i32
  }
  func.func @transform_2(%arg0: i32, %arg1: i32, %arg2: i32) -> (i32, i32) {
    %c0_i32 = arith.constant 0 : i32
    %c0_i32_0 = arith.constant 0 : i32
    %c0_i32_1 = arith.constant 0 : i32
    return %c0_i32, %c0_i32_0 : i32, i32
  }
  func.func @transform_3(%arg0: i32, %arg1: i32, %arg2: i32) -> (i32, i32, i32) {
    %c0_i32 = arith.constant 0 : i32
    return %arg0, %arg1, %arg2 : i32, i32, i32
  }
}

</mosaic_0001>

<llo_original>
// kernel: tpu_custom_call.1
$region0: #{tpu_custom_call.1}
  #allocation0 [shape = 'u32[]', space=smem, size = 0x4, offset = 0x4, fixed_abs, tag = 'smem constant byte address 0x4 - core index']
  #allocation1 [shape = 'u32[144,128]{1,0:T(1,128)}', space=vmem, size = 0x12000, scoped, tag = 'internal scratch']
  #allocation2 [shape = 'bf16[128,128]{1,0:T(16,128)(2,1)}', space=vmem, size = 0x8000, scoped, tag = 'scratch operand']
  #allocation3 [shape = 'f32[128,1]{1,0:T(8,128)}', space=vmem, size = 0x10000, scoped, tag = 'scratch operand']
  %s0 = inlined_call_operand.hbm [shape: bf16[2,128,128], index: 0, kind: input, shape index: {}]
  %s1 = inlined_call_operand.hbm [shape: bf16[2,128,128], index: 1, kind: input, shape index: {}]
  %s2 = inlined_call_operand.vmem [shape: f32[3,128], index: 2, kind: input, shape index: {}]
  %s3 = inlined_call_operand.hbm [shape: f32[2,128,128], index: 3, kind: output, shape index: {}]
  %s4 = sld [smem:[#allocation0]]
  $region57: #{tpu_custom_call.1} parent=0
    _
  %s6 = ssub.s32 1, %s4
  %s7 = scalar_select 0, %s6, %s4
  $region1: #{tpu_custom_call.1} parent=0
    #allocation4 [shape = 'u8[65536]{0}', space=vmem, size = 0x10000, scoped, tag = 'input window, operand 0']
    #allocation5 [shape = 's32[2]{0}', space=sflag, size = 0x8, scoped, tag = 'scoped memory for tpu_custom_call.1']
    #allocation6 [shape = 's32[2]{0}', space=sflag, size = 0x8, scoped, tag = 'scoped memory for tpu_custom_call.1']
    #allocation7 [shape = 'u8[65536]{0}', space=vmem, size = 0x10000, scoped, tag = 'input window, operand 1']
    #allocation8 [shape = 's32[2]{0}', space=sflag, size = 0x8, scoped, tag = 'scoped memory for tpu_custom_call.1']
    #allocation9 [shape = 'u8[131072]{0}', space=vmem, size = 0x20000, scoped, tag = 'output window, operand 0']
    %8 = vsyncpa [#allocation5], 0
    %s9 = scalar_lea.sflag [#allocation5], 1
    %10 = vsyncpa %s9, 0
    %11 = vsyncpa [#allocation8], 0
    %s12 = scalar_lea.sflag [#allocation8], 1
    %13 = vsyncpa %s12, 0
    %14 = vsyncpa [#allocation6], 0
    %s15 = scalar_lea.sflag [#allocation6], 1
    %16 = vsyncpa %s15, 0
    loop: start=0, step=1, limit=4
    $region2: #{tpu_custom_call.1} parent=1 // loop_pre_header
      _
    $region3: #{tpu_custom_call.1} parent=1 // loop_header
      %s18 = sphi 0, %s22
      %p19 = scmp.ge.s32.totalorder %s18, 4
      %s25 = sphi 0, %s44
      %s26 = sphi 0, %s40
      %s27 = sphi 0, %s36
      %s28 = sphi 0, %s25
      %s29 = sphi 0, %s26
      %s30 = sphi 0, %s27
      %s31 = sphi 0, %s28
      %s32 = sphi 0, %s29
      %s33 = sphi 0, %s30
      %s49 = sphi 0, %s51
      %s52 = sphi 0, %s49
      %s53 = sphi 0, %s52
      %s69 = sphi 0, %s53
      %s75 = sphi 0, %s77
      %s78 = sphi 0, %s75
      %s79 = sphi 0, %s78
      %s95 = sphi 0, %s79
      %s99 = sphi 0, %s99
      %s101 = sphi 0, %s99
      %s102 = sphi 0, %s101
      %s116 = sphi 0, %s102
      %s126 = sphi 0, %s128
      %s129 = sphi 0, %s126
      %s130 = sphi 0, %s129
      %s146 = sphi 0, %s130
    $region4: #{tpu_custom_call.1} parent=1 // loop_header_branch
      %21 = sbr.rel (%p19) target = $region8
    $region5: #{tpu_custom_call.1} parent=1 // loop_body
      %s23 = ssub.s32 %s18, 1
      %s24 = ssub.s32 %s18, 2
      %s34 = sadd.s32 1, %s27
      %p35 = scmp.ge.s32.totalorder %s34, 1
      %s36 = scalar_select %p35, 0, %s34
      %s37 = sadd.s32 1, %s26
      %s38 = scalar_select %p35, %s37, %s26
      %p39 = scmp.ge.s32.totalorder %s38, 1
      %s40 = scalar_select %p39, 0, %s38
      %s41 = sadd.s32 1, %s25
      %s42 = scalar_select %p39, %s41, %s25
      %p43 = scmp.ge.s32.totalorder %s42, 2
      %s44 = scalar_select %p43, 0, %s42
      %s45 = ssub.s32 %s25, %s44
      %s46 = ssub.s32 %s26, %s40
      %s47 = sor.u32 %s45, %s46
      %p48 = scmp.eq.s32.totalorder %s47, 0
      %s50 = sadd.s32 %s49, 1
      %s51 = scalar_select %p48, %s49, %s50
      %p54 = pneg %p48
      %p55 = scmp.eq.s32.totalorder %s18, 1
      %p56 = por %p54, %p55
      %p57 = scmp.ne.s32.totalorder %s49, %s52
      %p58 = scmp.eq.s32.totalorder %s18, 0
      %p59 = por %p57, %p58
      %p60 = scmp.ne.s32.totalorder %s49, %s52
      %p61 = scmp.eq.s32.totalorder %s23, 1
      %p62 = por %p60, %p61
      %p63 = scmp.ne.s32.totalorder %s52, %s53
      %p64 = scmp.eq.s32.totalorder %s23, 0
      %p65 = por %p63, %p64
      %p66 = scmp.ne.s32.totalorder %s52, %s53
      %p67 = scmp.eq.s32.totalorder %s24, 1
      %p68 = por %p66, %p67
      %p70 = scmp.ne.s32.totalorder %s53, %s69
      %p71 = scmp.eq.s32.totalorder %s24, 0
      %p72 = por %p70, %p71
      %s73 = ssub.s32 %s25, %s44
      %p74 = scmp.eq.s32.totalorder %s73, 0
      %s76 = sadd.s32 %s75, 1
      %s77 = scalar_select %p74, %s75, %s76
      %p80 = pneg %p74
      %p81 = scmp.eq.s32.totalorder %s18, 1
      %p82 = por %p80, %p81
      %p83 = scmp.ne.s32.totalorder %s75, %s78
      %p84 = scmp.eq.s32.totalorder %s18, 0
      %p85 = por %p83, %p84
      %p86 = scmp.ne.s32.totalorder %s75, %s78
      %p87 = scmp.eq.s32.totalorder %s23, 1
      %p88 = por %p86, %p87
      %p89 = scmp.ne.s32.totalorder %s78, %s79
      %p90 = scmp.eq.s32.totalorder %s23, 0
      %p91 = por %p89, %p90
      %p92 = scmp.ne.s32.totalorder %s78, %s79
      %p93 = scmp.eq.s32.totalorder %s24, 1
      %p94 = por %p92, %p93
      %p96 = scmp.ne.s32.totalorder %s79, %s95
      %p97 = scmp.eq.s32.totalorder %s24, 0
      %p98 = por %p96, %p97
      %s100 = sadd.s32 %s99, 1
      %p103 = scmp.eq.s32.totalorder %s18, 1
      %p104 = scmp.ne.s32.totalorder %s99, %s101
      %p105 = scmp.eq.s32.totalorder %s18, 0
      %p106 = por %p104, %p105
      %p107 = scmp.ne.s32.totalorder %s99, %s101
      %p108 = scmp.eq.s32.totalorder %s23, 1
      %p109 = por %p107, %p108
      %p110 = scmp.ne.s32.totalorder %s101, %s102
      %p111 = scmp.eq.s32.totalorder %s23, 0
      %p112 = por %p110, %p111
      %p113 = scmp.ne.s32.totalorder %s101, %s102
      %p114 = scmp.eq.s32.totalorder %s24, 1
      %p115 = por %p113, %p114
      %p117 = scmp.ne.s32.totalorder %s102, %s116
      %p118 = scmp.eq.s32.totalorder %s24, 0
      %p119 = por %p117, %p118
      %s120 = ssub.s32 %s25, %s44
      %s121 = ssub.s32 %s26, %s40
      %s122 = sor.u32 %s120, %s121
      %s123 = ssub.s32 %s27, %s36
      %s124 = sor.u32 %s122, %s123
      %p125 = scmp.eq.s32.totalorder %s124, 0
      %s127 = sadd.s32 %s126, 1
      %s128 = scalar_select %p125, %s126, %s127
      %p131 = pneg %p125
      %p132 = scmp.eq.s32.totalorder %s18, 1
      %p133 = por %p131, %p132
      %p134 = scmp.ne.s32.totalorder %s126, %s129
      %p135 = scmp.eq.s32.totalorder %s18, 0
      %p136 = por %p134, %p135
      %p137 = scmp.ne.s32.totalorder %s126, %s129
      %p138 = scmp.eq.s32.totalorder %s23, 1
      %p139 = por %p137, %p138
      %p140 = scmp.ne.s32.totalorder %s129, %s130
      %p141 = scmp.eq.s32.totalorder %s23, 0
      %p142 = por %p140, %p141
      %p143 = scmp.ne.s32.totalorder %s129, %s130
      %p144 = scmp.eq.s32.totalorder %s24, 1
      %p145 = por %p143, %p144
      %p147 = scmp.ne.s32.totalorder %s130, %s146
      %p148 = scmp.eq.s32.totalorder %s24, 0
      %p149 = por %p147, %p148
      %p150 = scmp.le.s32.totalorder 1, %s18
      %p151 = scmp.lt.s32.totalorder %s18, 3
      %p152 = pnand %p150, %p151
      %p153 = pneg %p152
      // Predicated region
      $region9: #{tpu_custom_call.1} parent=5 // pred_check
        _
      $region10: #{tpu_custom_call.1} parent=5 // pred_check_branch
        %155 = sbr.rel (%p152) target = $region12
      $region11: #{tpu_custom_call.1} parent=5 // pred_region
        %s156 = ssub.s32 %s18, 1
        // Predicated region
        $region13: #{tpu_custom_call.1} parent=11 // pred_check
          %p157 = pneg %p112
        $region14: #{tpu_custom_call.1} parent=11 // pred_check_branch
          %159 = sbr.rel (%p157) target = $region16
        $region15: #{tpu_custom_call.1} parent=11 // pred_region
          _
        $region16: #{tpu_custom_call.1} parent=11 // pred_fallthru
          _
      $region12: #{tpu_custom_call.1} parent=5 // pred_fallthru
        _
      %p160 = scmp.lt.s32.totalorder %s18, 2
      // Predicated region
      $region17: #{tpu_custom_call.1} parent=5 // pred_check
        %p161 = pneg %p160
      $region18: #{tpu_custom_call.1} parent=5 // pred_check_branch
        %163 = sbr.rel (%p161) target = $region20
      $region19: #{tpu_custom_call.1} parent=5 // pred_region
        // Predicated region
        $region21: #{tpu_custom_call.1} parent=19 // pred_check
          %p164 = pneg %p59
        $region22: #{tpu_custom_call.1} parent=19 // pred_check_branch
          %166 = sbr.rel (%p164) target = $region24
        $region23: #{tpu_custom_call.1} parent=19 // pred_region
          %s167 = sand.u32 %s49, 1
          %s168 = scalar_lea.sflag [#allocation5], %s167
          %s169 = sand.u32 %s49, 1
          %s170 = smul.addr %s169, 64
          %s171 = scalar_lea.vmem [#allocation4], %s170
          %s172 = smul.u32 16, %s26
          %s174 = ssub.s32 1024, 1024
          %175 = vsyncadd %s168, %s174
          %s176 = smul.addr %s25, 16
          %s177 = sadd.s32 %s172, %s176
          %s178 = smul.addr %s177, 64
          %s179 = scalar_lea.hbm %s0, %s178
          %s180 = sshll.u32 %s171, 4
          %s181 = int_to_ptr.vmem [resolvable:$true] %s180
          %186 = dma.hbm_to_vmem [thread:$0]  %s179, 1024, %s181, %s168, 64, 64, 4
        $region24: #{tpu_custom_call.1} parent=19 // pred_fallthru
          _
        // Predicated region
        $region25: #{tpu_custom_call.1} parent=19 // pred_check
          %p187 = pneg %p85
        $region26: #{tpu_custom_call.1} parent=19 // pred_check_branch
          %189 = sbr.rel (%p187) target = $region28
        $region27: #{tpu_custom_call.1} parent=19 // pred_region
          %s190 = sand.u32 %s75, 1
          %s191 = scalar_lea.sflag [#allocation8], %s190
          %s192 = sand.u32 %s75, 1
          %s193 = smul.addr %s192, 64
          %s194 = scalar_lea.vmem [#allocation7], %s193
          %s196 = ssub.s32 1024, 1024
          %197 = vsyncadd %s191, %s196
          %s198 = smul.addr %s25, 16
          %s199 = smul.addr %s198, 64
          %s200 = scalar_lea.hbm %s1, %s199
          %s201 = sshll.u32 %s194, 4
          %s202 = int_to_ptr.vmem [resolvable:$true] %s201
          %207 = dma.hbm_to_vmem [thread:$0]  %s200, 1024, %s202, %s191, 64, 64, 4
        $region28: #{tpu_custom_call.1} parent=19 // pred_fallthru
          _
      $region20: #{tpu_custom_call.1} parent=5 // pred_fallthru
        _
      %p208 = scmp.le.s32.totalorder 1, %s18
      %p209 = scmp.lt.s32.totalorder %s18, 3
      %p210 = pnand %p208, %p209
      %p211 = pneg %p210
      // Predicated region
      $region29: #{tpu_custom_call.1} parent=5 // pred_check
        _
      $region30: #{tpu_custom_call.1} parent=5 // pred_check_branch
        %213 = sbr.rel (%p210) target = $region32
      $region31: #{tpu_custom_call.1} parent=5 // pred_region
        %s214 = ssub.s32 %s18, 1
        %s215 = sand.u32 %s52, 1
        %s216 = scalar_lea.sflag [#allocation5], %s215
        %s217 = sand.u32 %s52, 1
        %s218 = smul.addr %s217, 64
        %s219 = scalar_lea.vmem [#allocation4], %s218
        // Predicated region
        $region33: #{tpu_custom_call.1} parent=31 // pred_check
          %p220 = pneg %p65
        $region34: #{tpu_custom_call.1} parent=31 // pred_check_branch
          %222 = sbr.rel (%p220) target = $region36
        $region35: #{tpu_custom_call.1} parent=31 // pred_region
          %223 = dma.done %s216, 1024
        $region36: #{tpu_custom_call.1} parent=31 // pred_fallthru
          _
        %s224 = sand.u32 %s78, 1
        %s225 = scalar_lea.sflag [#allocation8], %s224
        %s226 = sand.u32 %s78, 1
        %s227 = smul.addr %s226, 64
        %s228 = scalar_lea.vmem [#allocation7], %s227
        // Predicated region
        $region37: #{tpu_custom_call.1} parent=31 // pred_check
          %p229 = pneg %p91
        $region38: #{tpu_custom_call.1} parent=31 // pred_check_branch
          %231 = sbr.rel (%p229) target = $region40
        $region39: #{tpu_custom_call.1} parent=31 // pred_region
          %232 = dma.done %s225, 1024
        $region40: #{tpu_custom_call.1} parent=31 // pred_fallthru
          _
        %s233 = sand.u32 %s52, 1
        %s234 = scalar_lea.sflag [#allocation5], %s233
        %s235 = sand.u32 %s52, 1
        %s236 = smul.addr %s235, 64
        %s237 = scalar_lea.vmem [#allocation4], %s236
        %p238 = pneg %p65
        %p239 = pneg %p62
        %s240 = sand.u32 %s78, 1
        %s241 = scalar_lea.sflag [#allocation8], %s240
        %s242 = sand.u32 %s78, 1
        %s243 = smul.addr %s242, 64
        %s244 = scalar_lea.vmem [#allocation7], %s243
        %p245 = pneg %p91
        %p246 = pneg %p88
        %p247 = pneg %p112
        %p248 = pneg %p109
        %p249 = pneg %p142
        %p250 = pneg %p139
        %s251 = sand.u32 %s129, 1
        %s252 = scalar_lea.sflag [#allocation6], %s251
        %s253 = sand.u32 %s129, 1
        %s254 = smul.addr %s253, 128
        %s255 = scalar_lea.vmem [#allocation9], %s254
        %s256 = smul.u32 16, %s29
        %s257 = smul.u32 16, %s29
        %p259 = scmp.eq.s32.totalorder %s30, 0
        // Predicated region
        $region41: #{tpu_custom_call.1} parent=31 // pred_check
          %p260 = pneg %p259
        $region42: #{tpu_custom_call.1} parent=31 // pred_check_branch
          %262 = sbr.rel (%p260) target = $region44
        $region43: #{tpu_custom_call.1} parent=31 // pred_region
          %v263 = vld [vmem:[%s219] sm:$0xf]
          %v264 = vld [vmem:[%s219 + $0x4] sm:$0xf]
          %v265 = vld [vmem:[%s219 + $0x8] sm:$0xf]
          %v266 = vld [vmem:[%s219 + $0xc] sm:$0xf]
          %v267 = vld [vmem:[%s219 + $0x10] sm:$0xf]
          %v268 = vld [vmem:[%s219 + $0x14] sm:$0xf]
          %v269 = vld [vmem:[%s219 + $0x18] sm:$0xf]
          %v270 = vld [vmem:[%s219 + $0x1c] sm:$0xf]
          %v271 = vld [vmem:[%s219 + $0x20] sm:$0xf]
          %v272 = vld [vmem:[%s219 + $0x24] sm:$0xf]
          %v273 = vld [vmem:[%s219 + $0x28] sm:$0xf]
          %v274 = vld [vmem:[%s219 + $0x2c] sm:$0xf]
          %v275 = vld [vmem:[%s219 + $0x30] sm:$0xf]
          %v276 = vld [vmem:[%s219 + $0x34] sm:$0xf]
          %v277 = vld [vmem:[%s219 + $0x38] sm:$0xf]
          %v278 = vld [vmem:[%s219 + $0x3c] sm:$0xf]
          %v279 = vunpack.c.l.bf16 %v263
          %v280 = vunpack.c.l.bf16 %v264
          %v281 = vunpack.c.l.bf16 %v265
          %v282 = vunpack.c.l.bf16 %v266
          %v283 = vunpack.c.l.bf16 %v267
          %v284 = vunpack.c.l.bf16 %v268
          %v285 = vunpack.c.l.bf16 %v269
          %v286 = vunpack.c.l.bf16 %v270
          %v287 = vunpack.c.l.bf16 %v271
          %v288 = vunpack.c.l.bf16 %v272
          %v289 = vunpack.c.l.bf16 %v273
          %v290 = vunpack.c.l.bf16 %v274
          %v291 = vunpack.c.l.bf16 %v275
          %v292 = vunpack.c.l.bf16 %v276
          %v293 = vunpack.c.l.bf16 %v277
          %v294 = vunpack.c.l.bf16 %v278
          %v295 = vld [vmem:[%s2] sm:$0x1]
          %v296 = vld [vmem:[%s2 + $0x2] sm:$0x1]
          %v297 = vlaneseq
          %v298 = vshrl.u32 %v297, 7
          %v299 = vsub.s32 0, %v298
          %v300 = vrot.slane %v295, %v299
          %v301 = vmul.f32 %v279, %v300
          %v302 = vmul.f32 %v280, %v300
          %v303 = vmul.f32 %v281, %v300
          %v304 = vmul.f32 %v282, %v300
          %v305 = vmul.f32 %v283, %v300
          %v306 = vmul.f32 %v284, %v300
          %v307 = vmul.f32 %v285, %v300
          %v308 = vmul.f32 %v286, %v300
          %v309 = vmul.f32 %v287, %v300
          %v310 = vmul.f32 %v288, %v300
          %v311 = vmul.f32 %v289, %v300
          %v312 = vmul.f32 %v290, %v300
          %v313 = vmul.f32 %v291, %v300
          %v314 = vmul.f32 %v292, %v300
          %v315 = vmul.f32 %v293, %v300
          %v316 = vmul.f32 %v294, %v300
          %317 = vadd.xlane.f32.xlu0 %v301
          %v318 = vpop.xlane.xlu0 %317
          %319 = vadd.xlane.f32.xlu0 %v302
          %v320 = vpop.xlane.xlu0 %319
          %321 = vadd.xlane.f32.xlu0 %v303
          %v322 = vpop.xlane.xlu0 %321
          %323 = vadd.xlane.f32.xlu0 %v304
          %v324 = vpop.xlane.xlu0 %323
          %325 = vadd.xlane.f32.xlu0 %v305
          %v326 = vpop.xlane.xlu0 %325
          %327 = vadd.xlane.f32.xlu0 %v306
          %v328 = vpop.xlane.xlu0 %327
          %329 = vadd.xlane.f32.xlu0 %v307
          %v330 = vpop.xlane.xlu0 %329
          %331 = vadd.xlane.f32.xlu0 %v308
          %v332 = vpop.xlane.xlu0 %331
          %333 = vadd.xlane.f32.xlu0 %v309
          %v334 = vpop.xlane.xlu0 %333
          %335 = vadd.xlane.f32.xlu0 %v310
          %v336 = vpop.xlane.xlu0 %335
          %337 = vadd.xlane.f32.xlu0 %v311
          %v338 = vpop.xlane.xlu0 %337
          %339 = vadd.xlane.f32.xlu0 %v312
          %v340 = vpop.xlane.xlu0 %339
          %341 = vadd.xlane.f32.xlu0 %v313
          %v342 = vpop.xlane.xlu0 %341
          %343 = vadd.xlane.f32.xlu0 %v314
          %v344 = vpop.xlane.xlu0 %343
          %345 = vadd.xlane.f32.xlu0 %v315
          %v346 = vpop.xlane.xlu0 %345
          %347 = vadd.xlane.f32.xlu0 %v316
          %v348 = vpop.xlane.xlu0 %347
          %vm349 = vcmask 7168
          %350 = vst.msk [vmem:[#allocation3] sm:$0xff] %vm349, %v318
          %351 = vst.msk [vmem:[#allocation3 + $0x8] sm:$0xff] %vm349, %v320
          %352 = vst.msk [vmem:[#allocation3 + $0x10] sm:$0xff] %vm349, %v322
          %353 = vst.msk [vmem:[#allocation3 + $0x18] sm:$0xff] %vm349, %v324
          %354 = vst.msk [vmem:[#allocation3 + $0x20] sm:$0xff] %vm349, %v326
          %355 = vst.msk [vmem:[#allocation3 + $0x28] sm:$0xff] %vm349, %v328
          %356 = vst.msk [vmem:[#allocation3 + $0x30] sm:$0xff] %vm349, %v330
          %357 = vst.msk [vmem:[#allocation3 + $0x38] sm:$0xff] %vm349, %v332
          %358 = vst.msk [vmem:[#allocation3 + $0x40] sm:$0xff] %vm349, %v334
          %359 = vst.msk [vmem:[#allocation3 + $0x48] sm:$0xff] %vm349, %v336
          %360 = vst.msk [vmem:[#allocation3 + $0x50] sm:$0xff] %vm349, %v338
          %361 = vst.msk [vmem:[#allocation3 + $0x58] sm:$0xff] %vm349, %v340
          %362 = vst.msk [vmem:[#allocation3 + $0x60] sm:$0xff] %vm349, %v342
          %363 = vst.msk [vmem:[#allocation3 + $0x68] sm:$0xff] %vm349, %v344
          %364 = vst.msk [vmem:[#allocation3 + $0x70] sm:$0xff] %vm349, %v346
          %365 = vst.msk [vmem:[#allocation3 + $0x78] sm:$0xff] %vm349, %v348
          %v366 = vlaneseq
          %v367 = vshrl.u32 %v366, 7
          %v368 = vsub.s32 0, %v367
          %v369 = vrot.slane %v296, %v368
          %v370 = vmul.f32 %v279, %v369
          %v371 = vmul.f32 %v280, %v369
          %v372 = vmul.f32 %v281, %v369
          %v373 = vmul.f32 %v282, %v369
          %v374 = vmul.f32 %v283, %v369
          %v375 = vmul.f32 %v284, %v369
          %v376 = vmul.f32 %v285, %v369
          %v377 = vmul.f32 %v286, %v369
          %v378 = vmul.f32 %v287, %v369
          %v379 = vmul.f32 %v288, %v369
          %v380 = vmul.f32 %v289, %v369
          %v381 = vmul.f32 %v290, %v369
          %v382 = vmul.f32 %v291, %v369
          %v383 = vmul.f32 %v292, %v369
          %v384 = vmul.f32 %v293, %v369
          %v385 = vmul.f32 %v294, %v369
          %v386 = vpack.c.bf16 %v371, %v370
          %v387 = vpack.c.bf16 %v373, %v372
          %v388 = vpack.c.bf16 %v375, %v374
          %v389 = vpack.c.bf16 %v377, %v376
          %v390 = vpack.c.bf16 %v379, %v378
          %v391 = vpack.c.bf16 %v381, %v380
          %v392 = vpack.c.bf16 %v383, %v382
          %v393 = vpack.c.bf16 %v385, %v384
          %394 = vst [vmem:[#allocation2] sm:$0xff] %v386
          %395 = vst [vmem:[#allocation2 + $0x8] sm:$0xff] %v387
          %396 = vst [vmem:[#allocation2 + $0x10] sm:$0xff] %v388
          %397 = vst [vmem:[#allocation2 + $0x18] sm:$0xff] %v389
          %398 = vst [vmem:[#allocation2 + $0x20] sm:$0xff] %v390
          %399 = vst [vmem:[#allocation2 + $0x28] sm:$0xff] %v391
          %400 = vst [vmem:[#allocation2 + $0x30] sm:$0xff] %v392
          %401 = vst [vmem:[#allocation2 + $0x38] sm:$0xff] %v393
        $region44: #{tpu_custom_call.1} parent=31 // pred_fallthru
          _
        %s402 = smul.u32 %s30, 128
        %s403 = sshra.s32 %s402, 3
        %s404 = sand.u32 %s402, 7
        %s405 = smul.addr %s403, 4
        %s406 = scalar_lea.vmem %s228, %s405 [#allocation7]
        %v407 = vld [vmem:[%s406] sm:$0xf]
        %v408 = vld [vmem:[%s406 + $0x4] sm:$0xf]
        %v409 = vld [vmem:[%s406 + $0x8] sm:$0xf]
        %v410 = vld [vmem:[%s406 + $0xc] sm:$0xf]
        %v411 = vld [vmem:[%s406 + $0x10] sm:$0xf]
        %v412 = vld [vmem:[%s406 + $0x14] sm:$0xf]
        %v413 = vld [vmem:[%s406 + $0x18] sm:$0xf]
        %v414 = vld [vmem:[%s406 + $0x1c] sm:$0xf]
        %v415 = vld [vmem:[%s406 + $0x20] sm:$0xf]
        %v416 = vld [vmem:[%s406 + $0x24] sm:$0xf]
        %v417 = vld [vmem:[%s406 + $0x28] sm:$0xf]
        %v418 = vld [vmem:[%s406 + $0x2c] sm:$0xf]
        %v419 = vld [vmem:[%s406 + $0x30] sm:$0xf]
        %v420 = vld [vmem:[%s406 + $0x34] sm:$0xf]
        %v421 = vld [vmem:[%s406 + $0x38] sm:$0xf]
        %v422 = vld [vmem:[%s406 + $0x3c] sm:$0xf]
        %v423 = vld [vmem:[%s2 + $0x1] sm:$0x1]
        %v424 = vpack.c.bf16 %v423, %v423
        %v441 = vunpack.c.l.b16 %v407
        %v442 = vunpack.c.l.b16 %v408
        %v443 = vunpack.c.l.b16 %v409
        %v444 = vunpack.c.l.b16 %v410
        %v445 = vunpack.c.l.b16 %v411
        %v446 = vunpack.c.l.b16 %v412
        %v447 = vunpack.c.l.b16 %v413
        %v448 = vunpack.c.l.b16 %v414
        %v449 = vunpack.c.l.b16 %v415
        %v450 = vunpack.c.l.b16 %v416
        %v451 = vunpack.c.l.b16 %v417
        %v452 = vunpack.c.l.b16 %v418
        %v453 = vunpack.c.l.b16 %v419
        %v454 = vunpack.c.l.b16 %v420
        %v455 = vunpack.c.l.b16 %v421
        %v456 = vunpack.c.l.b16 %v422
        %v457 = vpack.c.b16 %v442, %v441
        %v458 = vpack.c.b16 %v444, %v443
        %v459 = vpack.c.b16 %v446, %v445
        %v460 = vpack.c.b16 %v448, %v447
        %v461 = vpack.c.b16 %v450, %v449
        %v462 = vpack.c.b16 %v452, %v451
        %v463 = vpack.c.b16 %v454, %v453
        %v464 = vpack.c.b16 %v456, %v455
        %473 = vmatprep.subr.bf16.mxu0 0
        %474 = vmatpush1.bf16.xpose.msra.mxu0 %v457
        %475 = vmatprep.subr.bf16.mxu0 0
        %476 = vmatpush1.bf16.xpose.msra.mxu0 %v458
        %477 = vmatprep.subr.bf16.mxu0 0
        %478 = vmatpush1.bf16.xpose.msra.mxu0 %v459
        %479 = vmatprep.subr.bf16.mxu0 0
        %480 = vmatpush1.bf16.xpose.msra.mxu0 %v460
        %481 = vmatprep.subr.bf16.mxu0 0
        %482 = vmatpush1.bf16.xpose.msra.mxu0 %v461
        %483 = vmatprep.subr.bf16.mxu0 0
        %484 = vmatpush1.bf16.xpose.msra.mxu0 %v462
        %485 = vmatprep.subr.bf16.mxu0 0
        %486 = vmatpush1.bf16.xpose.msra.mxu0 %v463
        %487 = vmatprep.subr.bf16.mxu0 0
        %488 = vmatpush1.bf16.xpose.msra.mxu0 %v464
        %489 = vmatprep.subr.bf16.mxu0 0
        %490 = vmatpush1.bf16.xpose.msra.mxu0 0
        %491 = vmatprep.subr.bf16.mxu0 0
        %492 = vmatpush1.bf16.xpose.msra.mxu0 0
        %493 = vmatprep.subr.bf16.mxu0 0
        %494 = vmatpush1.bf16.xpose.msra.mxu0 0
        %495 = vmatprep.subr.bf16.mxu0 0
        %496 = vmatpush1.bf16.xpose.msra.mxu0 0
        %497 = vmatprep.subr.bf16.mxu0 0
        %498 = vmatpush1.bf16.xpose.msra.mxu0 0
        %499 = vmatprep.subr.bf16.mxu0 0
        %500 = vmatpush1.bf16.xpose.msra.mxu0 0
        %501 = vmatprep.subr.bf16.mxu0 0
        %502 = vmatpush1.bf16.xpose.msra.mxu0 0
        %503 = vmatprep.subr.bf16.mxu0 0
        %504 = vmatpush1.bf16.xpose.msra.mxu0 0
        %505 = vmatprep.mubr.bf16.mxu0 0
        %506 = vmatmul.mubr.bf16.gmra.mrb[0].mxu0 %v424
        %v507 = vpop.f32.mrb[0].mxu0
        %v508 = vadd.f32 0.0, %v507
        %v509 = vpop.f32.mrb[0].mxu0
        %v510 = vpop.f32.mrb[0].mxu0
        %v511 = vpop.f32.mrb[0].mxu0
        %512 = vdwg.mxu0
        %v513 = vld [vmem:[#allocation2] sm:$0xff]
        %v514 = vld [vmem:[#allocation2 + $0x8] sm:$0xff]
        %v515 = vld [vmem:[#allocation2 + $0x10] sm:$0xff]
        %v516 = vld [vmem:[#allocation2 + $0x18] sm:$0xff]
        %v517 = vld [vmem:[#allocation2 + $0x20] sm:$0xff]
        %v518 = vld [vmem:[#allocation2 + $0x28] sm:$0xff]
        %v519 = vld [vmem:[#allocation2 + $0x30] sm:$0xff]
        %v520 = vld [vmem:[#allocation2 + $0x38] sm:$0xff]
        %v521 = vld [vmem:[#allocation3] sm:$0xff]
        %v522 = vld [vmem:[#allocation3 + $0x8] sm:$0xff]
        %v523 = vld [vmem:[#allocation3 + $0x10] sm:$0xff]
        %v524 = vld [vmem:[#allocation3 + $0x18] sm:$0xff]
        %v525 = vld [vmem:[#allocation3 + $0x20] sm:$0xff]
        %v526 = vld [vmem:[#allocation3 + $0x28] sm:$0xff]
        %v527 = vld [vmem:[#allocation3 + $0x30] sm:$0xff]
        %v528 = vld [vmem:[#allocation3 + $0x38] sm:$0xff]
        %v529 = vld [vmem:[#allocation3 + $0x40] sm:$0xff]
        %v530 = vld [vmem:[#allocation3 + $0x48] sm:$0xff]
        %v531 = vld [vmem:[#allocation3 + $0x50] sm:$0xff]
        %v532 = vld [vmem:[#allocation3 + $0x58] sm:$0xff]
        %v533 = vld [vmem:[#allocation3 + $0x60] sm:$0xff]
        %v534 = vld [vmem:[#allocation3 + $0x68] sm:$0xff]
        %v535 = vld [vmem:[#allocation3 + $0x70] sm:$0xff]
        %v536 = vld [vmem:[#allocation3 + $0x78] sm:$0xff]
        %538 = vset.pattern.permute.xlu0 0
        %539 = vperm.xlu0 %538, %v521
        %v540 = vpop.permute.xlu0 %539
        %543 = vset.pattern.permute.xlu0 0
        %544 = vperm.xlu0 %543, %v522
        %v545 = vpop.permute.xlu0 %544
        %548 = vset.pattern.permute.xlu0 0
        %549 = vperm.xlu0 %548, %v523
        %v550 = vpop.permute.xlu0 %549
        %553 = vset.pattern.permute.xlu0 0
        %554 = vperm.xlu0 %553, %v524
        %v555 = vpop.permute.xlu0 %554
        %558 = vset.pattern.permute.xlu0 0
        %559 = vperm.xlu0 %558, %v525
        %v560 = vpop.permute.xlu0 %559
        %563 = vset.pattern.permute.xlu0 0
        %564 = vperm.xlu0 %563, %v526
        %v565 = vpop.permute.xlu0 %564
        %568 = vset.pattern.permute.xlu0 0
        %569 = vperm.xlu0 %568, %v527
        %v570 = vpop.permute.xlu0 %569
        %573 = vset.pattern.permute.xlu0 0
        %574 = vperm.xlu0 %573, %v528
        %v575 = vpop.permute.xlu0 %574
        %578 = vset.pattern.permute.xlu0 0
        %579 = vperm.xlu0 %578, %v529
        %v580 = vpop.permute.xlu0 %579
        %583 = vset.pattern.permute.xlu0 0
        %584 = vperm.xlu0 %583, %v530
        %v585 = vpop.permute.xlu0 %584
        %588 = vset.pattern.permute.xlu0 0
        %589 = vperm.xlu0 %588, %v531
        %v590 = vpop.permute.xlu0 %589
        %593 = vset.pattern.permute.xlu0 0
        %594 = vperm.xlu0 %593, %v532
        %v595 = vpop.permute.xlu0 %594
        %598 = vset.pattern.permute.xlu0 0
        %599 = vperm.xlu0 %598, %v533
        %v600 = vpop.permute.xlu0 %599
        %603 = vset.pattern.permute.xlu0 0
        %604 = vperm.xlu0 %603, %v534
        %v605 = vpop.permute.xlu0 %604
        %608 = vset.pattern.permute.xlu0 0
        %609 = vperm.xlu0 %608, %v535
        %v610 = vpop.permute.xlu0 %609
        %613 = vset.pattern.permute.xlu0 0
        %614 = vperm.xlu0 %613, %v536
        %v615 = vpop.permute.xlu0 %614
        %617 = vmatprep.subr.bf16.mxu0 0
        %618 = vmatpush1.bf16.xpose.msra.mxu0 %v457
        %619 = vmatprep.subr.bf16.mxu0 0
        %620 = vmatpush1.bf16.xpose.msra.mxu0 %v458
        %621 = vmatprep.subr.bf16.mxu0 0
        %622 = vmatpush1.bf16.xpose.msra.mxu0 %v459
        %623 = vmatprep.subr.bf16.mxu0 0
        %624 = vmatpush1.bf16.xpose.msra.mxu0 %v460
        %625 = vmatprep.subr.bf16.mxu0 0
        %626 = vmatpush1.bf16.xpose.msra.mxu0 %v461
        %627 = vmatprep.subr.bf16.mxu0 0
        %628 = vmatpush1.bf16.xpose.msra.mxu0 %v462
        %629 = vmatprep.subr.bf16.mxu0 0
        %630 = vmatpush1.bf16.xpose.msra.mxu0 %v463
        %631 = vmatprep.subr.bf16.mxu0 0
        %632 = vmatpush1.bf16.xpose.msra.mxu0 %v464
        %633 = vmatprep.subr.bf16.mxu0 0
        %634 = vmatpush1.bf16.xpose.msra.mxu0 0
        %635 = vmatprep.subr.bf16.mxu0 0
        %636 = vmatpush1.bf16.xpose.msra.mxu0 0
        %637 = vmatprep.subr.bf16.mxu0 0
        %638 = vmatpush1.bf16.xpose.msra.mxu0 0
        %639 = vmatprep.subr.bf16.mxu0 0
        %640 = vmatpush1.bf16.xpose.msra.mxu0 0
        %641 = vmatprep.subr.bf16.mxu0 0
        %642 = vmatpush1.bf16.xpose.msra.mxu0 0
        %643 = vmatprep.subr.bf16.mxu0 0
        %644 = vmatpush1.bf16.xpose.msra.mxu0 0
        %645 = vmatprep.subr.bf16.mxu0 0
        %646 = vmatpush1.bf16.xpose.msra.mxu0 0
        %647 = vmatprep.subr.bf16.mxu0 0
        %648 = vmatpush1.bf16.xpose.msra.mxu0 0
        %649 = vmatprep.mubr.bf16.mxu0 0
        %650 = vmatmul.mubr.bf16.gmra.mrb[0].mxu0 %v513
        %v651 = vpop.f32.mrb[0].mxu0
        %v652 = vadd.f32 %v540, %v651
        %v653 = vpop.f32.mrb[0].mxu0
        %v654 = vpop.f32.mrb[0].mxu0
        %v655 = vadd.f32 %v545, %v654
        %v656 = vpop.f32.mrb[0].mxu0
        %657 = vmatprep.mubr.bf16.mxu0 0
        %658 = vmatmul.mubr.bf16.gmra.mrb[0].mxu0 %v514
        %v659 = vpop.f32.mrb[0].mxu0
        %v660 = vadd.f32 %v550, %v659
        %v661 = vpop.f32.mrb[0].mxu0
        %v662 = vpop.f32.mrb[0].mxu0
        %v663 = vadd.f32 %v555, %v662
        %v664 = vpop.f32.mrb[0].mxu0
        %665 = vmatprep.mubr.bf16.mxu0 0
        %666 = vmatmul.mubr.bf16.gmra.mrb[0].mxu0 %v515
        %v667 = vpop.f32.mrb[0].mxu0
        %v668 = vadd.f32 %v560, %v667
        %v669 = vpop.f32.mrb[0].mxu0
        %v670 = vpop.f32.mrb[0].mxu0
        %v671 = vadd.f32 %v565, %v670
        %v672 = vpop.f32.mrb[0].mxu0
        %673 = vmatprep.mubr.bf16.mxu0 0
        %674 = vmatmul.mubr.bf16.gmra.mrb[0].mxu0 %v516
        %v675 = vpop.f32.mrb[0].mxu0
        %v676 = vadd.f32 %v570, %v675
        %v677 = vpop.f32.mrb[0].mxu0
        %v678 = vpop.f32.mrb[0].mxu0
        %v679 = vadd.f32 %v575, %v678
        %v680 = vpop.f32.mrb[0].mxu0
        %681 = vmatprep.mubr.bf16.mxu0 0
        %682 = vmatmul.mubr.bf16.gmra.mrb[0].mxu0 %v517
        %v683 = vpop.f32.mrb[0].mxu0
        %v684 = vadd.f32 %v580, %v683
        %v685 = vpop.f32.mrb[0].mxu0
        %v686 = vpop.f32.mrb[0].mxu0
        %v687 = vadd.f32 %v585, %v686
        %v688 = vpop.f32.mrb[0].mxu0
        %689 = vmatprep.mubr.bf16.mxu0 0
        %690 = vmatmul.mubr.bf16.gmra.mrb[0].mxu0 %v518
        %v691 = vpop.f32.mrb[0].mxu0
        %v692 = vadd.f32 %v590, %v691
        %v693 = vpop.f32.mrb[0].mxu0
        %v694 = vpop.f32.mrb[0].mxu0
        %v695 = vadd.f32 %v595, %v694
        %v696 = vpop.f32.mrb[0].mxu0
        %697 = vmatprep.mubr.bf16.mxu0 0
        %698 = vmatmul.mubr.bf16.gmra.mrb[0].mxu0 %v519
        %v699 = vpop.f32.mrb[0].mxu0
        %v700 = vadd.f32 %v600, %v699
        %v701 = vpop.f32.mrb[0].mxu0
        %v702 = vpop.f32.mrb[0].mxu0
        %v703 = vadd.f32 %v605, %v702
        %v704 = vpop.f32.mrb[0].mxu0
        %705 = vmatprep.mubr.bf16.mxu0 0
        %706 = vmatmul.mubr.bf16.gmra.mrb[0].mxu0 %v520
        %v707 = vpop.f32.mrb[0].mxu0
        %v708 = vadd.f32 %v610, %v707
        %v709 = vpop.f32.mrb[0].mxu0
        %v710 = vpop.f32.mrb[0].mxu0
        %v711 = vadd.f32 %v615, %v710
        %v712 = vpop.f32.mrb[0].mxu0
        %713 = vdwg.mxu0
        %v714 = vlaneseq
        %v715 = vshrl.u32 %v714, 7
        %v716 = vsub.s32 0, %v715
        %v717 = vrot.slane %v508, %v716
        %v718 = vadd.f32 %v652, %v717
        %v719 = vadd.f32 %v655, %v717
        %v720 = vadd.f32 %v660, %v717
        %v721 = vadd.f32 %v663, %v717
        %v722 = vadd.f32 %v668, %v717
        %v723 = vadd.f32 %v671, %v717
        %v724 = vadd.f32 %v676, %v717
        %v725 = vadd.f32 %v679, %v717
        %v726 = vadd.f32 %v684, %v717
        %v727 = vadd.f32 %v687, %v717
        %v728 = vadd.f32 %v692, %v717
        %v729 = vadd.f32 %v695, %v717
        %v730 = vadd.f32 %v700, %v717
        %v731 = vadd.f32 %v703, %v717
        %v732 = vadd.f32 %v708, %v717
        %v733 = vadd.f32 %v711, %v717
        %734 = vst [vmem:[%s255] sm:$0xff] %v718
        %735 = vst [vmem:[%s255 + $0x8] sm:$0xff] %v719
        %736 = vst [vmem:[%s255 + $0x10] sm:$0xff] %v720
        %737 = vst [vmem:[%s255 + $0x18] sm:$0xff] %v721
        %738 = vst [vmem:[%s255 + $0x20] sm:$0xff] %v722
        %739 = vst [vmem:[%s255 + $0x28] sm:$0xff] %v723
        %740 = vst [vmem:[%s255 + $0x30] sm:$0xff] %v724
        %741 = vst [vmem:[%s255 + $0x38] sm:$0xff] %v725
        %742 = vst [vmem:[%s255 + $0x40] sm:$0xff] %v726
        %743 = vst [vmem:[%s255 + $0x48] sm:$0xff] %v727
        %744 = vst [vmem:[%s255 + $0x50] sm:$0xff] %v728
        %745 = vst [vmem:[%s255 + $0x58] sm:$0xff] %v729
        %746 = vst [vmem:[%s255 + $0x60] sm:$0xff] %v730
        %747 = vst [vmem:[%s255 + $0x68] sm:$0xff] %v731
        %748 = vst [vmem:[%s255 + $0x70] sm:$0xff] %v732
        %749 = vst [vmem:[%s255 + $0x78] sm:$0xff] %v733
        %s750 = sand.u32 %s129, 1
        %s751 = scalar_lea.sflag [#allocation6], %s750
        %s752 = sand.u32 %s129, 1
        %s753 = smul.addr %s752, 128
        %s754 = scalar_lea.vmem [#allocation9], %s753
        // Predicated region
        $region45: #{tpu_custom_call.1} parent=31 // pred_check
          %p755 = pneg %p139
        $region46: #{tpu_custom_call.1} parent=31 // pred_check_branch
          %757 = sbr.rel (%p755) target = $region48
        $region47: #{tpu_custom_call.1} parent=31 // pred_region
          %s758 = smul.u32 16, %s29
          %s760 = ssub.s32 2048, 2048
          %761 = vsyncadd %s751, %s760
          %s762 = sadd.s32 %s30, %s758
          %s763 = smul.addr %s28, 16
          %s764 = sadd.s32 %s762, %s763
          %s765 = smul.addr %s764, 128
          %s766 = scalar_lea.hbm %s3, %s765
          %s767 = sshll.u32 %s754, 4
          %s768 = int_to_ptr.vmem [resolvable:$true] %s767
          %773 = dma.vmem_to_hbm [thread:$0]  %s768, 2048, %s766, %s751, 128, 128, 8
        $region48: #{tpu_custom_call.1} parent=31 // pred_fallthru
          _
      $region32: #{tpu_custom_call.1} parent=5 // pred_fallthru
        _
      %p774 = scmp.le.s32.totalorder 2, %s18
      // Predicated region
      $region49: #{tpu_custom_call.1} parent=5 // pred_check
        %p775 = pneg %p774
      $region50: #{tpu_custom_call.1} parent=5 // pred_check_branch
        %777 = sbr.rel (%p775) target = $region52
      $region51: #{tpu_custom_call.1} parent=5 // pred_region
        %s778 = ssub.s32 %s18, 2
        // Predicated region
        $region53: #{tpu_custom_call.1} parent=51 // pred_check
          %p779 = pneg %p145
        $region54: #{tpu_custom_call.1} parent=51 // pred_check_branch
          %781 = sbr.rel (%p779) target = $region56
        $region55: #{tpu_custom_call.1} parent=51 // pred_region
          %s782 = sand.u32 %s130, 1
          %s783 = scalar_lea.sflag [#allocation6], %s782
          %s784 = sand.u32 %s130, 1
          %s785 = smul.addr %s784, 128
          %s786 = scalar_lea.vmem [#allocation9], %s785
          %787 = dma.done %s783, 2048
        $region56: #{tpu_custom_call.1} parent=51 // pred_fallthru
          _
      $region52: #{tpu_custom_call.1} parent=5 // pred_fallthru
        _
    $region6: #{tpu_custom_call.1} parent=1 // loop_footer
      %s22 = sadd.s32 1, %s18
    $region7: #{tpu_custom_call.1} parent=1 // loop_footer_branch
      %17 = sbr.rel target = $region3
    $region8: #{tpu_custom_call.1} parent=1 // loop_exit
      _
    %788 = vsyncpa [#allocation5], 1
    %s789 = scalar_lea.sflag [#allocation5], 1
    %790 = vsyncpa %s789, 1
    %791 = vsyncpa [#allocation8], 1
    %s792 = scalar_lea.sflag [#allocation8], 1
    %793 = vsyncpa %s792, 1
    %794 = vsyncpa [#allocation6], 1
    %s795 = scalar_lea.sflag [#allocation6], 1
    %796 = vsyncpa %s795, 1

</llo_original>
